<compile_context>
chip_gen: v7x
topology: tpu7x:2x2x1
jax: 0.10.0
libtpu: 0.0.40
codegen_flags: <defaults>
</compile_context>

<pallas_src>
import jax
import jax.numpy as jnp
from jax.experimental import pallas as pl
from jax.experimental.pallas import tpu as pltpu

M, K, N = 20, 5, 20
REPS = 49
OUT_N = REPS * N            # 980
PERIOD = 640                # lcm(N=20, lane width 128): pattern period in lanes
PERIOD_REPS = PERIOD // N   # 32 copies of x2 cover one full period
TAIL = OUT_N - PERIOD       # 340 remaining lanes, starting at aligned offset 640


def mm_tile_kernel(x1_ref, x2_ref, o_ref):
    x1 = x1_ref[...]   # (20, 5)  f32
    x2 = x2_ref[...]   # (5, 20)  f32

    # Replicate only x2 (one sublane-row of vregs) to one 640-lane period.
    # This is ~3x less cross-lane (XLU) work than tiling the (20,20) result.
    x2_rep = jnp.concatenate([x2] * PERIOD_REPS, axis=1)   # (5, 640)

    # (20,5)@(5,640) as a K=5 unrolled broadcast-FMA on the VPU, computed
    # directly at output width.  The MXU would be <2% utilized here and its
    # result-FIFO/pop latency cannot be hidden in a single-block kernel.
    blk = x1[:, 0:1] * x2_rep[0:1, :]
    for k in range(1, K):                                  # static, fully unrolled
        blk = blk + x1[:, k:k + 1] * x2_rep[k:k + 1, :]    # (20, 640)

    # Lanes [0, 640): one fully lane-aligned dense store (5 full lane-vregs
    # per sublane group).
    o_ref[:, 0:PERIOD] = blk
    # Lanes [640, 980): offset 640 = 5*128 is lane-aligned and 640 % 20 == 0,
    # so the periodic pattern restarts at mm column 0 -> a prefix of blk is
    # exactly the missing tail.  Values in blk are dtype-correct already.
    o_ref[:, PERIOD:OUT_N] = blk[:, 0:TAIL]


def model_forward(x1, x2):
    bytes_accessed = (M * K + K * N + M * OUT_N) * 4
    return pl.pallas_call(
        mm_tile_kernel,
        out_shape=jax.ShapeDtypeStruct((M, OUT_N), jnp.float32),
        # Gridless: single invocation, whole problem (~80 KiB) resident in VMEM.
        in_specs=[
            pl.BlockSpec(memory_space=pltpu.MemorySpace.VMEM),
            pl.BlockSpec(memory_space=pltpu.MemorySpace.VMEM),
        ],
        out_specs=pl.BlockSpec(memory_space=pltpu.MemorySpace.VMEM),
        cost_estimate=pl.CostEstimate(
            flops=2 * M * K * OUT_N,
            transcendentals=0,
            bytes_accessed=bytes_accessed,
        ),
    )(x1, x2)


if __name__ == "__main__":
    key = jax.random.PRNGKey(0)
    k1, k2 = jax.random.split(key)
    x1 = jax.random.normal(k1, (M, K), dtype=jnp.float32)
    x2 = jax.random.normal(k2, (K, N), dtype=jnp.float32)

    out = model_forward(x1, x2)
    jax.block_until_ready(out)

    assert out.shape == (M, OUT_N), out.shape
    ref = jnp.tile(x1 @ x2, (1, REPS))
    assert jnp.allclose(out, ref, atol=1e-4, rtol=1e-5), "mismatch vs. JAX reference"

    print("KERNEL_OK")
</pallas_src>

<mosaic_0001>
module attributes {stable_mosaic.version = 11 : i64} {
  func.func @mm_tile_kernel(%arg0: memref<20x5xf32, #tpu.memory_space<vmem>>, %arg1: memref<5x20xf32, #tpu.memory_space<vmem>>, %arg2: memref<20x980xf32, #tpu.memory_space<vmem>>) attributes {dimension_semantics = [], scalar_prefetch = 0 : i64, scratch_operands = 0 : i64, tpu.core_type = #tpu.core_type<tc>} {
    %c0 = arith.constant 0 : index
    %c0_0 = arith.constant 0 : index
    %0 = vector.load %arg0[%c0, %c0_0] : memref<20x5xf32, #tpu.memory_space<vmem>>, vector<20x5xf32>
    %c0_1 = arith.constant 0 : index
    %c0_2 = arith.constant 0 : index
    %1 = vector.load %arg1[%c0_1, %c0_2] : memref<5x20xf32, #tpu.memory_space<vmem>>, vector<5x20xf32>
    %2 = tpu.concatenate %1, %1, %1, %1, %1, %1, %1, %1, %1, %1, %1, %1, %1, %1, %1, %1 in 1 : vector<5x20xf32>, vector<5x20xf32>, vector<5x20xf32>, vector<5x20xf32>, vector<5x20xf32>, vector<5x20xf32>, vector<5x20xf32>, vector<5x20xf32>, vector<5x20xf32>, vector<5x20xf32>, vector<5x20xf32>, vector<5x20xf32>, vector<5x20xf32>, vector<5x20xf32>, vector<5x20xf32>, vector<5x20xf32> -> vector<5x320xf32>
    %3 = tpu.concatenate %1, %1, %1, %1, %1, %1, %1, %1, %1, %1, %1, %1, %1, %1, %1, %1 in 1 : vector<5x20xf32>, vector<5x20xf32>, vector<5x20xf32>, vector<5x20xf32>, vector<5x20xf32>, vector<5x20xf32>, vector<5x20xf32>, vector<5x20xf32>, vector<5x20xf32>, vector<5x20xf32>, vector<5x20xf32>, vector<5x20xf32>, vector<5x20xf32>, vector<5x20xf32>, vector<5x20xf32>, vector<5x20xf32> -> vector<5x320xf32>
    %4 = tpu.concatenate %2, %3 in 1 : vector<5x320xf32>, vector<5x320xf32> -> vector<5x640xf32>
    %5 = vector.extract_strided_slice %0 {offsets = [0, 0], sizes = [20, 1], strides = [1, 1]} : vector<20x5xf32> to vector<20x1xf32>
    %6 = vector.extract_strided_slice %4 {offsets = [0, 0], sizes = [1, 640], strides = [1, 1]} : vector<5x640xf32> to vector<1x640xf32>
    %7 = vector.broadcast %5 : vector<20x1xf32> to vector<20x640xf32>
    %8 = vector.broadcast %6 : vector<1x640xf32> to vector<20x640xf32>
    %9 = arith.mulf %7, %8 : vector<20x640xf32>
    %10 = vector.extract_strided_slice %0 {offsets = [0, 1], sizes = [20, 1], strides = [1, 1]} : vector<20x5xf32> to vector<20x1xf32>
    %11 = vector.extract_strided_slice %4 {offsets = [1, 0], sizes = [1, 640], strides = [1, 1]} : vector<5x640xf32> to vector<1x640xf32>
    %12 = vector.broadcast %10 : vector<20x1xf32> to vector<20x640xf32>
    %13 = vector.broadcast %11 : vector<1x640xf32> to vector<20x640xf32>
    %14 = arith.mulf %12, %13 : vector<20x640xf32>
    %15 = arith.addf %9, %14 : vector<20x640xf32>
    %16 = vector.extract_strided_slice %0 {offsets = [0, 2], sizes = [20, 1], strides = [1, 1]} : vector<20x5xf32> to vector<20x1xf32>
    %17 = vector.extract_strided_slice %4 {offsets = [2, 0], sizes = [1, 640], strides = [1, 1]} : vector<5x640xf32> to vector<1x640xf32>
    %18 = vector.broadcast %16 : vector<20x1xf32> to vector<20x640xf32>
    %19 = vector.broadcast %17 : vector<1x640xf32> to vector<20x640xf32>
    %20 = arith.mulf %18, %19 : vector<20x640xf32>
    %21 = arith.addf %15, %20 : vector<20x640xf32>
    %22 = vector.extract_strided_slice %0 {offsets = [0, 3], sizes = [20, 1], strides = [1, 1]} : vector<20x5xf32> to vector<20x1xf32>
    %23 = vector.extract_strided_slice %4 {offsets = [3, 0], sizes = [1, 640], strides = [1, 1]} : vector<5x640xf32> to vector<1x640xf32>
    %24 = vector.broadcast %22 : vector<20x1xf32> to vector<20x640xf32>
    %25 = vector.broadcast %23 : vector<1x640xf32> to vector<20x640xf32>
    %26 = arith.mulf %24, %25 : vector<20x640xf32>
    %27 = arith.addf %21, %26 : vector<20x640xf32>
    %28 = vector.extract_strided_slice %0 {offsets = [0, 4], sizes = [20, 1], strides = [1, 1]} : vector<20x5xf32> to vector<20x1xf32>
    %29 = vector.extract_strided_slice %4 {offsets = [4, 0], sizes = [1, 640], strides = [1, 1]} : vector<5x640xf32> to vector<1x640xf32>
    %30 = vector.broadcast %28 : vector<20x1xf32> to vector<20x640xf32>
    %31 = vector.broadcast %29 : vector<1x640xf32> to vector<20x640xf32>
    %32 = arith.mulf %30, %31 : vector<20x640xf32>
    %33 = arith.addf %27, %32 : vector<20x640xf32>
    %c0_3 = arith.constant 0 : index
    %c0_4 = arith.constant 0 : index
    %34 = vector.load %arg2[%c0_3, %c0_4] : memref<20x980xf32, #tpu.memory_space<vmem>>, vector<20x640xf32>
    tpu.vector_store %arg2[%c0_3, %c0_4], %33 {strides = array<i32>} : memref<20x980xf32, #tpu.memory_space<vmem>>, vector<20x640xf32>,
    %35 = vector.extract_strided_slice %33 {offsets = [0, 0], sizes = [20, 340], strides = [1, 1]} : vector<20x640xf32> to vector<20x340xf32>
    %c0_5 = arith.constant 0 : index
    %c640 = arith.constant 640 : index
    %36 = vector.load %arg2[%c0_5, %c640] : memref<20x980xf32, #tpu.memory_space<vmem>>, vector<20x340xf32>
    tpu.vector_store %arg2[%c0_5, %c640], %35 {strides = array<i32>} : memref<20x980xf32, #tpu.memory_space<vmem>>, vector<20x340xf32>,
    return
  }
}

</mosaic_0001>

<llo_original>
// kernel: tpu_custom_call.1
$region0: #{tpu_custom_call.1}
  #allocation0 [shape = 'u32[]', space=smem, size = 0x4, offset = 0x4, fixed_abs, tag = 'smem constant byte address 0x4 - core index']
  #allocation1 [shape = 'u32[144,128]{1,0:T(1,128)}', space=vmem, size = 0x12000, scoped, tag = 'internal scratch']
  %s0 = inlined_call_operand.vmem [shape: f32[20,5], index: 0, kind: input, shape index: {}]
  %s1 = inlined_call_operand.vmem [shape: f32[5,20], index: 1, kind: input, shape index: {}]
  %s2 = inlined_call_operand.hbm [shape: f32[20,980], index: 2, kind: output, shape index: {}]
  %s3 = sld [smem:[#allocation0]]
  $region18: #{tpu_custom_call.1} parent=0
    _
  %s5 = ssub.s32 1, %s3
  %s6 = scalar_select 0, %s5, %s3
  $region1: #{tpu_custom_call.1} parent=0
    #allocation2 [shape = 'u8[98304]{0}', space=vmem, size = 0x18000, scoped, tag = 'output window, operand 0, single buffered']
    #allocation3 [shape = 's32[1]{0}', space=sflag, size = 0x4, scoped, tag = 'scoped memory for tpu_custom_call.1']
    %7 = vsyncpa [#allocation3], 0
    // Predicated region
    $region2: #{tpu_custom_call.1} parent=1 // pred_check
      _
    $region3: #{tpu_custom_call.1} parent=1 // pred_check_branch
      %9 = sbr.rel (0) target = $region5
    $region4: #{tpu_custom_call.1} parent=1 // pred_region
      _
    $region5: #{tpu_custom_call.1} parent=1 // pred_fallthru
      _
    // Predicated region
    $region6: #{tpu_custom_call.1} parent=1 // pred_check
      _
    $region7: #{tpu_custom_call.1} parent=1 // pred_check_branch
      %11 = sbr.rel (0) target = $region9
    $region8: #{tpu_custom_call.1} parent=1 // pred_region
      _
    $region9: #{tpu_custom_call.1} parent=1 // pred_fallthru
      _
    %v12 = vld [vmem:[%s0] sm:$0xff]
    %v13 = vld [vmem:[%s0 + $0x8] sm:$0xff]
    %v14 = vld [vmem:[%s0 + $0x10] sm:$0xf]
    %v15 = vld [vmem:[%s1] sm:$0x1f]
    %17 = vrot.lane.b32.xlu0 %v15, 20
    %v18 = vpop.permute.xlu0 %17
    %20 = vrot.lane.b32.xlu0 %v15, 40
    %v21 = vpop.permute.xlu0 %20
    %23 = vrot.lane.b32.xlu0 %v15, 60
    %v24 = vpop.permute.xlu0 %23
    %26 = vrot.lane.b32.xlu0 %v15, 80
    %v27 = vpop.permute.xlu0 %26
    %29 = vrot.lane.b32.xlu0 %v15, 100
    %v30 = vpop.permute.xlu0 %29
    %32 = vrot.lane.b32.xlu0 %v15, 120
    %v33 = vpop.permute.xlu0 %32
    %35 = vrot.lane.b32.xlu0 %v15, 12
    %v36 = vpop.permute.xlu0 %35
    %38 = vrot.lane.b32.xlu0 %v15, 32
    %v39 = vpop.permute.xlu0 %38
    %41 = vrot.lane.b32.xlu0 %v15, 52
    %v42 = vpop.permute.xlu0 %41
    %44 = vrot.lane.b32.xlu0 %v15, 72
    %v45 = vpop.permute.xlu0 %44
    %47 = vrot.lane.b32.xlu0 %v15, 92
    %v48 = vpop.permute.xlu0 %47
    %50 = vrot.lane.b32.xlu0 %v15, 112
    %v51 = vpop.permute.xlu0 %50
    %53 = vrot.lane.b32.xlu0 %v15, 4
    %v54 = vpop.permute.xlu0 %53
    %56 = vrot.lane.b32.xlu0 %v15, 24
    %v57 = vpop.permute.xlu0 %56
    %59 = vrot.lane.b32.xlu0 %v15, 44
    %v60 = vpop.permute.xlu0 %59
    %vm62 = vcmask 162816
    %v63 = vsel %vm62, %v15, %v18
    %vm64 = vcmask 326656
    %v65 = vsel %vm64, %v63, %v21
    %vm66 = vcmask 490496
    %v67 = vsel %vm66, %v65, %v24
    %vm68 = vcmask 654336
    %v69 = vsel %vm68, %v67, %v27
    %vm70 = vcmask 818176
    %v71 = vsel %vm70, %v69, %v30
    %vm72 = vcmask 982016
    %v73 = vsel %vm72, %v71, %v33
    %vm74 = vcmask 97280
    %v75 = vsel %vm74, %v33, %v36
    %vm76 = vcmask 261120
    %v77 = vsel %vm76, %v75, %v39
    %vm78 = vcmask 424960
    %v79 = vsel %vm78, %v77, %v42
    %vm80 = vcmask 588800
    %v81 = vsel %vm80, %v79, %v45
    %vm82 = vcmask 752640
    %v83 = vsel %vm82, %v81, %v48
    %vm84 = vcmask 916480
    %v85 = vsel %vm84, %v83, %v51
    %vm86 = vcmask 31744
    %v87 = vsel %vm86, %v51, %v54
    %vm88 = vcmask 195584
    %v89 = vsel %vm88, %v87, %v57
    %vm90 = vcmask 359424
    %v91 = vsel %vm90, %v89, %v60
    %95 = vrot.lane.b32.xlu0 %v73, 64
    %v96 = vpop.permute.xlu0 %95
    %97 = vrot.lane.b32.xlu0 %v85, 64
    %v98 = vpop.permute.xlu0 %97
    %99 = vrot.lane.b32.xlu0 %v91, 64
    %v100 = vpop.permute.xlu0 %99
    %vm101 = vcmask 523264
    %v102 = vsel %vm101, %v96, %v98
    %v103 = vsel %vm101, %v98, %v100
    %v107 = vsel %vm101, %v91, %v96
    %109 = vset.pattern.permute.xlu0 0
    %110 = vperm.xlu0 %109, %v12
    %v111 = vpop.permute.xlu0 %110
    %114 = vset.pattern.permute.xlu0 0
    %115 = vperm.xlu0 %114, %v13
    %v116 = vpop.permute.xlu0 %115
    %119 = vset.pattern.permute.xlu0 0
    %120 = vperm.xlu0 %119, %v14
    %v121 = vpop.permute.xlu0 %120
    %v123 = vlaneseq
    %v124 = vshrl.u32 %v123, 7
    %v125 = vsub.s32 0, %v124
    %v126 = vrot.slane %v73, %v125
    %v127 = vlaneseq
    %v128 = vshrl.u32 %v127, 7
    %v129 = vsub.s32 0, %v128
    %v130 = vrot.slane %v85, %v129
    %v131 = vlaneseq
    %v132 = vshrl.u32 %v131, 7
    %v133 = vsub.s32 0, %v132
    %v134 = vrot.slane %v107, %v133
    %v135 = vlaneseq
    %v136 = vshrl.u32 %v135, 7
    %v137 = vsub.s32 0, %v136
    %v138 = vrot.slane %v102, %v137
    %v139 = vlaneseq
    %v140 = vshrl.u32 %v139, 7
    %v141 = vsub.s32 0, %v140
    %v142 = vrot.slane %v103, %v141
    %v143 = vmul.f32 %v111, %v126
    %v144 = vmul.f32 %v111, %v130
    %v145 = vmul.f32 %v111, %v134
    %v146 = vmul.f32 %v111, %v138
    %v147 = vmul.f32 %v111, %v142
    %v148 = vmul.f32 %v116, %v126
    %v149 = vmul.f32 %v116, %v130
    %v150 = vmul.f32 %v116, %v134
    %v151 = vmul.f32 %v116, %v138
    %v152 = vmul.f32 %v116, %v142
    %v153 = vmul.f32 %v121, %v126
    %v154 = vmul.f32 %v121, %v130
    %v155 = vmul.f32 %v121, %v134
    %v156 = vmul.f32 %v121, %v138
    %v157 = vmul.f32 %v121, %v142
    %158 = vset.pattern.permute.xlu0 1
    %159 = vperm.xlu0 %158, %v12
    %v160 = vpop.permute.xlu0 %159
    %162 = vset.pattern.permute.xlu0 1
    %163 = vperm.xlu0 %162, %v13
    %v164 = vpop.permute.xlu0 %163
    %166 = vset.pattern.permute.xlu0 1
    %167 = vperm.xlu0 %166, %v14
    %v168 = vpop.permute.xlu0 %167
    %v170 = vlaneseq
    %v171 = vshrl.u32 %v170, 7
    %v172 = vsub.s32 1, %v171
    %v173 = vrot.slane %v73, %v172
    %v174 = vlaneseq
    %v175 = vshrl.u32 %v174, 7
    %v176 = vsub.s32 1, %v175
    %v177 = vrot.slane %v85, %v176
    %v178 = vlaneseq
    %v179 = vshrl.u32 %v178, 7
    %v180 = vsub.s32 1, %v179
    %v181 = vrot.slane %v107, %v180
    %v182 = vlaneseq
    %v183 = vshrl.u32 %v182, 7
    %v184 = vsub.s32 1, %v183
    %v185 = vrot.slane %v102, %v184
    %v186 = vlaneseq
    %v187 = vshrl.u32 %v186, 7
    %v188 = vsub.s32 1, %v187
    %v189 = vrot.slane %v103, %v188
    %v190 = vmul.f32 %v160, %v173
    %v191 = vmul.f32 %v160, %v177
    %v192 = vmul.f32 %v160, %v181
    %v193 = vmul.f32 %v160, %v185
    %v194 = vmul.f32 %v160, %v189
    %v195 = vmul.f32 %v164, %v173
    %v196 = vmul.f32 %v164, %v177
    %v197 = vmul.f32 %v164, %v181
    %v198 = vmul.f32 %v164, %v185
    %v199 = vmul.f32 %v164, %v189
    %v200 = vmul.f32 %v168, %v173
    %v201 = vmul.f32 %v168, %v177
    %v202 = vmul.f32 %v168, %v181
    %v203 = vmul.f32 %v168, %v185
    %v204 = vmul.f32 %v168, %v189
    %v205 = vadd.f32 %v143, %v190
    %v206 = vadd.f32 %v144, %v191
    %v207 = vadd.f32 %v145, %v192
    %v208 = vadd.f32 %v146, %v193
    %v209 = vadd.f32 %v147, %v194
    %v210 = vadd.f32 %v148, %v195
    %v211 = vadd.f32 %v149, %v196
    %v212 = vadd.f32 %v150, %v197
    %v213 = vadd.f32 %v151, %v198
    %v214 = vadd.f32 %v152, %v199
    %v215 = vadd.f32 %v153, %v200
    %v216 = vadd.f32 %v154, %v201
    %v217 = vadd.f32 %v155, %v202
    %v218 = vadd.f32 %v156, %v203
    %v219 = vadd.f32 %v157, %v204
    %220 = vset.pattern.permute.xlu0 2
    %221 = vperm.xlu0 %220, %v12
    %v222 = vpop.permute.xlu0 %221
    %224 = vset.pattern.permute.xlu0 2
    %225 = vperm.xlu0 %224, %v13
    %v226 = vpop.permute.xlu0 %225
    %228 = vset.pattern.permute.xlu0 2
    %229 = vperm.xlu0 %228, %v14
    %v230 = vpop.permute.xlu0 %229
    %v232 = vlaneseq
    %v233 = vshrl.u32 %v232, 7
    %v234 = vsub.s32 2, %v233
    %v235 = vrot.slane %v73, %v234
    %v236 = vlaneseq
    %v237 = vshrl.u32 %v236, 7
    %v238 = vsub.s32 2, %v237
    %v239 = vrot.slane %v85, %v238
    %v240 = vlaneseq
    %v241 = vshrl.u32 %v240, 7
    %v242 = vsub.s32 2, %v241
    %v243 = vrot.slane %v107, %v242
    %v244 = vlaneseq
    %v245 = vshrl.u32 %v244, 7
    %v246 = vsub.s32 2, %v245
    %v247 = vrot.slane %v102, %v246
    %v248 = vlaneseq
    %v249 = vshrl.u32 %v248, 7
    %v250 = vsub.s32 2, %v249
    %v251 = vrot.slane %v103, %v250
    %v252 = vmul.f32 %v222, %v235
    %v253 = vmul.f32 %v222, %v239
    %v254 = vmul.f32 %v222, %v243
    %v255 = vmul.f32 %v222, %v247
    %v256 = vmul.f32 %v222, %v251
    %v257 = vmul.f32 %v226, %v235
    %v258 = vmul.f32 %v226, %v239
    %v259 = vmul.f32 %v226, %v243
    %v260 = vmul.f32 %v226, %v247
    %v261 = vmul.f32 %v226, %v251
    %v262 = vmul.f32 %v230, %v235
    %v263 = vmul.f32 %v230, %v239
    %v264 = vmul.f32 %v230, %v243
    %v265 = vmul.f32 %v230, %v247
    %v266 = vmul.f32 %v230, %v251
    %v267 = vadd.f32 %v205, %v252
    %v268 = vadd.f32 %v206, %v253
    %v269 = vadd.f32 %v207, %v254
    %v270 = vadd.f32 %v208, %v255
    %v271 = vadd.f32 %v209, %v256
    %v272 = vadd.f32 %v210, %v257
    %v273 = vadd.f32 %v211, %v258
    %v274 = vadd.f32 %v212, %v259
    %v275 = vadd.f32 %v213, %v260
    %v276 = vadd.f32 %v214, %v261
    %v277 = vadd.f32 %v215, %v262
    %v278 = vadd.f32 %v216, %v263
    %v279 = vadd.f32 %v217, %v264
    %v280 = vadd.f32 %v218, %v265
    %v281 = vadd.f32 %v219, %v266
    %282 = vset.pattern.permute.xlu0 3
    %283 = vperm.xlu0 %282, %v12
    %v284 = vpop.permute.xlu0 %283
    %286 = vset.pattern.permute.xlu0 3
    %287 = vperm.xlu0 %286, %v13
    %v288 = vpop.permute.xlu0 %287
    %290 = vset.pattern.permute.xlu0 3
    %291 = vperm.xlu0 %290, %v14
    %v292 = vpop.permute.xlu0 %291
    %v294 = vlaneseq
    %v295 = vshrl.u32 %v294, 7
    %v296 = vsub.s32 3, %v295
    %v297 = vrot.slane %v73, %v296
    %v298 = vlaneseq
    %v299 = vshrl.u32 %v298, 7
    %v300 = vsub.s32 3, %v299
    %v301 = vrot.slane %v85, %v300
    %v302 = vlaneseq
    %v303 = vshrl.u32 %v302, 7
    %v304 = vsub.s32 3, %v303
    %v305 = vrot.slane %v107, %v304
    %v306 = vlaneseq
    %v307 = vshrl.u32 %v306, 7
    %v308 = vsub.s32 3, %v307
    %v309 = vrot.slane %v102, %v308
    %v310 = vlaneseq
    %v311 = vshrl.u32 %v310, 7
    %v312 = vsub.s32 3, %v311
    %v313 = vrot.slane %v103, %v312
    %v314 = vmul.f32 %v284, %v297
    %v315 = vmul.f32 %v284, %v301
    %v316 = vmul.f32 %v284, %v305
    %v317 = vmul.f32 %v284, %v309
    %v318 = vmul.f32 %v284, %v313
    %v319 = vmul.f32 %v288, %v297
    %v320 = vmul.f32 %v288, %v301
    %v321 = vmul.f32 %v288, %v305
    %v322 = vmul.f32 %v288, %v309
    %v323 = vmul.f32 %v288, %v313
    %v324 = vmul.f32 %v292, %v297
    %v325 = vmul.f32 %v292, %v301
    %v326 = vmul.f32 %v292, %v305
    %v327 = vmul.f32 %v292, %v309
    %v328 = vmul.f32 %v292, %v313
    %v329 = vadd.f32 %v267, %v314
    %v330 = vadd.f32 %v268, %v315
    %v331 = vadd.f32 %v269, %v316
    %v332 = vadd.f32 %v270, %v317
    %v333 = vadd.f32 %v271, %v318
    %v334 = vadd.f32 %v272, %v319
    %v335 = vadd.f32 %v273, %v320
    %v336 = vadd.f32 %v274, %v321
    %v337 = vadd.f32 %v275, %v322
    %v338 = vadd.f32 %v276, %v323
    %v339 = vadd.f32 %v277, %v324
    %v340 = vadd.f32 %v278, %v325
    %v341 = vadd.f32 %v279, %v326
    %v342 = vadd.f32 %v280, %v327
    %v343 = vadd.f32 %v281, %v328
    %344 = vset.pattern.permute.xlu0 4
    %345 = vperm.xlu0 %344, %v12
    %v346 = vpop.permute.xlu0 %345
    %348 = vset.pattern.permute.xlu0 4
    %349 = vperm.xlu0 %348, %v13
    %v350 = vpop.permute.xlu0 %349
    %352 = vset.pattern.permute.xlu0 4
    %353 = vperm.xlu0 %352, %v14
    %v354 = vpop.permute.xlu0 %353
    %v356 = vlaneseq
    %v357 = vshrl.u32 %v356, 7
    %v358 = vsub.s32 4, %v357
    %v359 = vrot.slane %v73, %v358
    %v360 = vlaneseq
    %v361 = vshrl.u32 %v360, 7
    %v362 = vsub.s32 4, %v361
    %v363 = vrot.slane %v85, %v362
    %v364 = vlaneseq
    %v365 = vshrl.u32 %v364, 7
    %v366 = vsub.s32 4, %v365
    %v367 = vrot.slane %v107, %v366
    %v368 = vlaneseq
    %v369 = vshrl.u32 %v368, 7
    %v370 = vsub.s32 4, %v369
    %v371 = vrot.slane %v102, %v370
    %v372 = vlaneseq
    %v373 = vshrl.u32 %v372, 7
    %v374 = vsub.s32 4, %v373
    %v375 = vrot.slane %v103, %v374
    %v376 = vmul.f32 %v346, %v359
    %v377 = vmul.f32 %v346, %v363
    %v378 = vmul.f32 %v346, %v367
    %v379 = vmul.f32 %v346, %v371
    %v380 = vmul.f32 %v346, %v375
    %v381 = vmul.f32 %v350, %v359
    %v382 = vmul.f32 %v350, %v363
    %v383 = vmul.f32 %v350, %v367
    %v384 = vmul.f32 %v350, %v371
    %v385 = vmul.f32 %v350, %v375
    %v386 = vmul.f32 %v354, %v359
    %v387 = vmul.f32 %v354, %v363
    %v388 = vmul.f32 %v354, %v367
    %v389 = vmul.f32 %v354, %v371
    %v390 = vmul.f32 %v354, %v375
    %v391 = vadd.f32 %v329, %v376
    %v392 = vadd.f32 %v330, %v377
    %v393 = vadd.f32 %v331, %v378
    %v394 = vadd.f32 %v332, %v379
    %v395 = vadd.f32 %v333, %v380
    %v396 = vadd.f32 %v334, %v381
    %v397 = vadd.f32 %v335, %v382
    %v398 = vadd.f32 %v336, %v383
    %v399 = vadd.f32 %v337, %v384
    %v400 = vadd.f32 %v338, %v385
    %v401 = vadd.f32 %v339, %v386
    %v402 = vadd.f32 %v340, %v387
    %v403 = vadd.f32 %v341, %v388
    %v404 = vadd.f32 %v342, %v389
    %v405 = vadd.f32 %v343, %v390
    %406 = vst [vmem:[#allocation2] sm:$0xff] %v391
    %407 = vst [vmem:[#allocation2 + $0x8] sm:$0xff] %v392
    %408 = vst [vmem:[#allocation2 + $0x10] sm:$0xff] %v393
    %409 = vst [vmem:[#allocation2 + $0x18] sm:$0xff] %v394
    %410 = vst [vmem:[#allocation2 + $0x20] sm:$0xff] %v395
    %411 = vst [vmem:[#allocation2 + $0x40] sm:$0xff] %v396
    %412 = vst [vmem:[#allocation2 + $0x48] sm:$0xff] %v397
    %413 = vst [vmem:[#allocation2 + $0x50] sm:$0xff] %v398
    %414 = vst [vmem:[#allocation2 + $0x58] sm:$0xff] %v399
    %415 = vst [vmem:[#allocation2 + $0x60] sm:$0xff] %v400
    %416 = vst [vmem:[#allocation2 + $0x80] sm:$0xf] %v401
    %417 = vst [vmem:[#allocation2 + $0x88] sm:$0xf] %v402
    %418 = vst [vmem:[#allocation2 + $0x90] sm:$0xf] %v403
    %419 = vst [vmem:[#allocation2 + $0x98] sm:$0xf] %v404
    %420 = vst [vmem:[#allocation2 + $0xa0] sm:$0xf] %v405
    %421 = vst [vmem:[#allocation2 + $0x28] sm:$0xff] %v391
    %422 = vst [vmem:[#allocation2 + $0x30] sm:$0xff] %v392
    %vm423 = vcmask 687104
    %424 = vst.msk [vmem:[#allocation2 + $0x38] sm:$0xff] %vm423, %v393
    %425 = vst [vmem:[#allocation2 + $0x68] sm:$0xff] %v396
    %426 = vst [vmem:[#allocation2 + $0x70] sm:$0xff] %v397
    %427 = vst.msk [vmem:[#allocation2 + $0x78] sm:$0xff] %vm423, %v398
    %428 = vst [vmem:[#allocation2 + $0xa8] sm:$0xf] %v401
    %429 = vst [vmem:[#allocation2 + $0xb0] sm:$0xf] %v402
    %vm430 = vcmask 683008
    %431 = vst.msk [vmem:[#allocation2 + $0xb8] sm:$0xf] %vm430, %v403
    // Predicated region
    $region10: #{tpu_custom_call.1} parent=1 // pred_check
      _
    $region11: #{tpu_custom_call.1} parent=1 // pred_check_branch
      %433 = sbr.rel (0) target = $region13
    $region12: #{tpu_custom_call.1} parent=1 // pred_region
      %s435 = ssub.s32 3072, 3072
      %436 = vsyncadd [#allocation3], %s435
      %s437 = sshll.u32 [#allocation2], 4
      %s438 = int_to_ptr.vmem [resolvable:$true] %s437
      %443 = dma.vmem_to_hbm [thread:$0]  %s438, 3072, %s2, [#allocation3], 1024, 1024, 64
    $region13: #{tpu_custom_call.1} parent=1 // pred_fallthru
      _
    // Predicated region
    $region14: #{tpu_custom_call.1} parent=1 // pred_check
      _
    $region15: #{tpu_custom_call.1} parent=1 // pred_check_branch
      %445 = sbr.rel (0) target = $region17
    $region16: #{tpu_custom_call.1} parent=1 // pred_region
      %446 = dma.done [#allocation3], 3072
    $region17: #{tpu_custom_call.1} parent=1 // pred_fallthru
      _
    %447 = vsyncpa [#allocation3], 1

</llo_original>
